<compile_context>
chip_gen: v7x
topology: tpu7x:2x2x1
jax: 0.10.0
libtpu: 0.0.40
codegen_flags: <defaults>
</compile_context>

<pallas_src>
import jax
import jax.numpy as jnp
from jax import lax
from jax.experimental import pallas as pl
from jax.experimental.pallas import tpu as pltpu


def _round_up(a, m):
    return ((a + m - 1) // m) * m


def vib_kernel(nrows_ref, x_ref, w_ref, b_ref, eps_ref, z_ref, kl_ref):
    i = pl.program_id(0)
    x = x_ref[...]                                        # [tile_b, D_in]

    # Single fused MXU matmul (std|mu halves share one 2*D_out-wide RHS), f32 accumulation.
    stats = jnp.dot(x, w_ref[...], preferred_element_type=jnp.float32) + b_ref[...]
    d_out = stats.shape[1] // 2
    std = stats[:, :d_out]                                # lane-aligned when d_out % 128 == 0
    mu = stats[:, d_out:]

    # Reparameterized sample: eps streamed in (generated in the wrapper, see header note).
    eps = eps_ref[...].astype(jnp.float32)
    z_ref[...] = (mu + std * eps).astype(z_ref.dtype)

    # Per-tile partial KL, lane-dense: sum over this tile's (unpadded) batch rows, keep the
    # D_out lane axis. Wrapper finishes: loss = 0.5 * sum(partials) / B
    #   == -0.5 * mean_B sum_D (1 + log var - mu^2 - var).
    var = std * std
    kl_elem = mu * mu + var - jnp.log(var) - 1.0

    # Mask rows that are batch padding (global row index >= true batch size).
    tile_b = x.shape[0]
    row = lax.broadcasted_iota(jnp.int32, (tile_b, 1), 0) + i * tile_b
    kl_elem = jnp.where(row < nrows_ref[0], kl_elem, 0.0)

    kl_ref[...] = jnp.sum(kl_elem, axis=0, keepdims=True)[None]   # (1, 1, d_out)


def prepare_vib_params(w, b, matmul_dtype=None):
    """One-time parameter prep (do NOT call per forward step).

    w: [2*D_out, D_in] nn.Linear weight (rows 0..D_out-1 -> std, rest -> mu).
    b: [2*D_out] nn.Linear bias.
    matmul_dtype: optional operand dtype for the matmul (e.g. jnp.bfloat16 on v5e/v6e/v7x
                  to halve HBM traffic); accumulation stays f32 in-kernel.
    Returns (w_cat [D_in, 2*D_out], b_cat [1, 2*D_out] f32).
    """
    w_cat = jnp.transpose(w)                              # x @ w.T  ==  x @ w_cat
    if matmul_dtype is not None:
        w_cat = w_cat.astype(matmul_dtype)
    b_cat = jnp.reshape(b, (1, -1)).astype(jnp.float32)
    return w_cat, b_cat


def vib_forward(x, w_cat, b_cat, key, *, tile_b=512):
    """VIB forward.

    x:     [B, D_in] activations.
    w_cat: [D_in, 2*D_out] prepared weight (see prepare_vib_params).
    b_cat: [1, 2*D_out] prepared f32 bias.
    key:   jax.random key for the reparameterization noise (eps ~ N(0, 1)).
    tile_b: batch rows per grid step. 512-1024 on v5e/v6e; size smaller on v7x (64 MiB VMEM)
            so  2*tile_b*(D_in + D_out)*bytes + 2*D_in*2*D_out*bytes  fits the scoped limit.
    Returns (z [B, D_out], loss scalar).
    """
    B, d_in = x.shape
    two_d_out = w_cat.shape[1]
    d_out = two_d_out // 2
    out_dtype = x.dtype

    compute_dtype = w_cat.dtype
    if x.dtype != compute_dtype:
        x = x.astype(compute_dtype)
    eps = jax.random.normal(key, (B, d_out), dtype=jnp.float32).astype(compute_dtype)

    # Tile sizing + ragged-batch padding (padded rows masked out of the KL in-kernel).
    tile_b = max(8, min(int(tile_b), _round_up(B, 8)))
    tile_b = _round_up(tile_b, 8)
    B_pad = _round_up(B, tile_b)
    if B_pad != B:
        pad = B_pad - B
        x = jnp.pad(x, ((0, pad), (0, 0)))
        eps = jnp.pad(eps, ((0, pad), (0, 0)))
    num_tiles = B_pad // tile_b

    nrows = jnp.asarray([B], dtype=jnp.int32)             # true batch size -> SMEM

    grid_spec = pltpu.PrefetchScalarGridSpec(
        num_scalar_prefetch=1,                            # nrows lands in SMEM
        grid=(num_tiles,),
        in_specs=[
            pl.BlockSpec((tile_b, d_in), lambda i, n: (i, 0)),      # x: tiled over batch
            pl.BlockSpec((d_in, two_d_out), lambda i, n: (0, 0)),   # W_cat: VMEM-resident
            pl.BlockSpec((1, two_d_out), lambda i, n: (0, 0)),      # bias:  VMEM-resident
            pl.BlockSpec((tile_b, d_out), lambda i, n: (i, 0)),     # eps: tiled over batch
        ],
        out_specs=(
            pl.BlockSpec((tile_b, d_out), lambda i, n: (i, 0)),     # z: tiled over batch
            pl.BlockSpec((1, 1, d_out), lambda i, n: (i, 0, 0)),    # per-tile KL partial
        ),
    )

    z_pad, kl_partials = pl.pallas_call(
        vib_kernel,
        grid_spec=grid_spec,
        out_shape=(
            jax.ShapeDtypeStruct((B_pad, d_out), out_dtype),
            jax.ShapeDtypeStruct((num_tiles, 1, d_out), jnp.float32),
        ),
        compiler_params=pltpu.CompilerParams(
            dimension_semantics=("parallel",),            # megacore shards the batch tiles
        ),
    )(nrows, x, w_cat, b_cat, eps)

    z = z_pad[:B] if B_pad != B else z_pad
    # Finish the reduction outside the kernel (cross-tile accumulation + mean over B).
    loss = 0.5 * jnp.sum(kl_partials) / B
    return z, loss


def _reference(x, w, b, eps):
    stats = jnp.dot(x, jnp.transpose(w), precision=lax.Precision.HIGHEST) + b
    d_out = w.shape[0] // 2
    std, mu = stats[:, :d_out], stats[:, d_out:]
    var = std ** 2
    z = mu + std * eps
    loss = -0.5 * jnp.mean(jnp.sum(1.0 + jnp.log(var) - mu ** 2 - var, axis=1))
    return z, loss


if __name__ == "__main__":
    # VIB(input_dim=128, output_dim=128), batch=256 (lane-aligned small shapes).
    B, D_IN, D_OUT = 256, 128, 128

    key = jax.random.PRNGKey(0)
    k_x, k_w, k_b, k_eps, k_eps2 = jax.random.split(key, 5)

    x = jax.random.normal(k_x, (B, D_IN), dtype=jnp.float32)
    # nn.Linear(input_dim, 2*output_dim): weight [2*D_OUT, D_IN], bias [2*D_OUT].
    w = jax.random.normal(k_w, (2 * D_OUT, D_IN), dtype=jnp.float32) * 0.1
    b = jax.random.normal(k_b, (2 * D_OUT,), dtype=jnp.float32) * 0.01

    # Parameter prep once (f32 operands here so the numeric check is tight; pass
    # matmul_dtype=jnp.bfloat16 in production to halve HBM traffic).
    w_cat, b_cat = prepare_vib_params(w, b, matmul_dtype=jnp.float32)

    # ---- Even batch: 2 tiles of 128 ----
    z, loss = vib_forward(x, w_cat, b_cat, k_eps, tile_b=128)
    jax.block_until_ready((z, loss))

    eps_ref = jax.random.normal(k_eps, (B, D_OUT), dtype=jnp.float32)
    z_ref, loss_ref = _reference(x, w, b, eps_ref)

    assert z.shape == (B, D_OUT), "bad z shape"
    assert bool(jnp.all(jnp.isfinite(z))), "non-finite sample"
    assert bool(jnp.allclose(z, z_ref, rtol=2e-3, atol=2e-3)), "z mismatch"
    assert bool(jnp.allclose(loss, loss_ref, rtol=2e-3, atol=1e-2)), "loss mismatch"

    # ---- Ragged batch: 200 rows -> padded to 256, padded rows masked out of the KL ----
    B2 = 200
    x2 = x[:B2]
    z2, loss2 = vib_forward(x2, w_cat, b_cat, k_eps2, tile_b=128)
    jax.block_until_ready((z2, loss2))

    eps2_ref = jax.random.normal(k_eps2, (B2, D_OUT), dtype=jnp.float32)
    z2_ref, loss2_ref = _reference(x2, w, b, eps2_ref)

    assert z2.shape == (B2, D_OUT), "bad ragged z shape"
    assert bool(jnp.all(jnp.isfinite(z2))), "non-finite ragged sample"
    assert bool(jnp.allclose(z2, z2_ref, rtol=2e-3, atol=2e-3)), "ragged z mismatch"
    assert bool(jnp.allclose(loss2, loss2_ref, rtol=2e-3, atol=1e-2)), "ragged loss mismatch"

    print("KERNEL_OK")
</pallas_src>

<mosaic_0001>
module attributes {stable_mosaic.version = 11 : i64} {
  func.func @vib_kernel(%arg0: i32, %arg1: memref<1xi32, #tpu.memory_space<smem>>, %arg2: memref<128x128xf32, #tpu.memory_space<vmem>>, %arg3: memref<128x256xf32, #tpu.memory_space<vmem>>, %arg4: memref<1x256xf32, #tpu.memory_space<vmem>>, %arg5: memref<128x128xf32, #tpu.memory_space<vmem>>, %arg6: memref<128x128xf32, #tpu.memory_space<vmem>>, %arg7: memref<1x1x128xf32, #tpu.memory_space<vmem>>) attributes {dimension_semantics = [#tpu.dimension_semantics<parallel>], iteration_bounds = array<i64: 2>, scalar_prefetch = 1 : i64, scratch_operands = 0 : i64, tpu.core_type = #tpu.core_type<tc>, window_params = [{transform_indices = @transform_0, window_bounds = array<i64: 128, 128>}, {pipeline_mode = #tpu.pipeline_mode<synchronous>, transform_indices = @transform_1, window_bounds = array<i64: 128, 256>}, {pipeline_mode = #tpu.pipeline_mode<synchronous>, transform_indices = @transform_2, window_bounds = array<i64: 1, 256>}, {transform_indices = @transform_3, window_bounds = array<i64: 128, 128>}, {transform_indices = @transform_4, window_bounds = array<i64: 128, 128>}, {transform_indices = @transform_5, window_bounds = array<i64: 1, 1, 128>}]} {
    %c0 = arith.constant 0 : index
    %c0_0 = arith.constant 0 : index
    %0 = vector.load %arg2[%c0, %c0_0] : memref<128x128xf32, #tpu.memory_space<vmem>>, vector<128x128xf32>
    %c0_1 = arith.constant 0 : index
    %c0_2 = arith.constant 0 : index
    %1 = vector.load %arg3[%c0_1, %c0_2] : memref<128x256xf32, #tpu.memory_space<vmem>>, vector<128x256xf32>
    %cst = arith.constant dense<0.000000e+00> : vector<128x256xf32>
    %2 = tpu.matmul %0, %1, %cst {dimension_numbers = #tpu.dot_dimension_numbers<[1], [0], [0], [1], [0, 0, 1, 1], [], []>} : vector<128x128xf32>, vector<128x256xf32>, vector<128x256xf32> -> vector<128x256xf32>
    %c0_3 = arith.constant 0 : index
    %c0_4 = arith.constant 0 : index
    %3 = vector.load %arg4[%c0_3, %c0_4] : memref<1x256xf32, #tpu.memory_space<vmem>>, vector<1x256xf32>
    %4 = vector.broadcast %3 : vector<1x256xf32> to vector<128x256xf32>
    %5 = arith.addf %2, %4 : vector<128x256xf32>
    %6 = vector.extract_strided_slice %5 {offsets = [0, 0], sizes = [128, 128], strides = [1, 1]} : vector<128x256xf32> to vector<128x128xf32>
    %7 = vector.extract_strided_slice %5 {offsets = [0, 128], sizes = [128, 128], strides = [1, 1]} : vector<128x256xf32> to vector<128x128xf32>
    %c0_5 = arith.constant 0 : index
    %c0_6 = arith.constant 0 : index
    %8 = vector.load %arg5[%c0_5, %c0_6] : memref<128x128xf32, #tpu.memory_space<vmem>>, vector<128x128xf32>
    %9 = arith.mulf %6, %8 : vector<128x128xf32>
    %10 = arith.addf %7, %9 : vector<128x128xf32>
    %c0_7 = arith.constant 0 : index
    %c0_8 = arith.constant 0 : index
    %11 = vector.load %arg6[%c0_7, %c0_8] : memref<128x128xf32, #tpu.memory_space<vmem>>, vector<128x128xf32>
    tpu.vector_store %arg6[%c0_7, %c0_8], %10 {strides = array<i32>} : memref<128x128xf32, #tpu.memory_space<vmem>>, vector<128x128xf32>,
    %12 = arith.mulf %6, %6 : vector<128x128xf32>
    %13 = arith.mulf %7, %7 : vector<128x128xf32>
    %14 = arith.addf %13, %12 : vector<128x128xf32>
    %15 = math.log %12 : vector<128x128xf32>
    %16 = arith.subf %14, %15 : vector<128x128xf32>
    %cst_9 = arith.constant 1.000000e+00 : f32
    %17 = vector.broadcast %cst_9 : f32 to vector<128x128xf32>
    %18 = arith.subf %16, %17 : vector<128x128xf32>
    %19 = tpu.iota {dimensions = array<i32: 0>} : vector<128x1xi32>
    %c128_i32 = arith.constant 128 : i32
    %20 = arith.muli %arg0, %c128_i32 : i32
    %21 = vector.broadcast %20 : i32 to vector<128x1xi32>
    %22 = arith.addi %19, %21 : vector<128x1xi32>
    %c0_10 = arith.constant 0 : index
    %23 = memref.load %arg1[%c0_10] : memref<1xi32, #tpu.memory_space<smem>>
    %24 = vector.broadcast %23 : i32 to vector<128x1xi32>
    %25 = arith.cmpi slt, %22, %24 : vector<128x1xi32>
    %cst_11 = arith.constant 0.000000e+00 : f32
    %26 = vector.shape_cast %25 : vector<128x1xi1> to vector<128x1xi1>
    %27 = vector.broadcast %26 : vector<128x1xi1> to vector<128x128xi1>
    %28 = vector.broadcast %cst_11 : f32 to vector<128x128xf32>
    %29 = arith.select %27, %18, %28 : vector<128x128xi1>, vector<128x128xf32>
    %cst_12 = arith.constant dense<0.000000e+00> : vector<128xf32>
    %30 = vector.multi_reduction <add>, %29, %cst_12 [0] : vector<128x128xf32> to vector<128xf32>
    %31 = vector.shape_cast %30 : vector<128xf32> to vector<1x128xf32>
    %32 = vector.shape_cast %31 : vector<1x128xf32> to vector<1x1x128xf32>
    %c0_13 = arith.constant 0 : index
    %c0_14 = arith.constant 0 : index
    %c0_15 = arith.constant 0 : index
    %33 = vector.load %arg7[%c0_13, %c0_14, %c0_15] : memref<1x1x128xf32, #tpu.memory_space<vmem>>, vector<1x1x128xf32>
    tpu.vector_store %arg7[%c0_13, %c0_14, %c0_15], %32 {strides = array<i32>} : memref<1x1x128xf32, #tpu.memory_space<vmem>>, vector<1x1x128xf32>,
    return
  }
  func.func @transform_0(%arg0: i32, %arg1: memref<1xi32, #tpu.memory_space<smem>>) -> (i32, i32) {
    %c0_i32 = arith.constant 0 : i32
    %c0_i32_0 = arith.constant 0 : i32
    return %arg0, %c0_i32 : i32, i32
  }
  func.func @transform_1(%arg0: i32, %arg1: memref<1xi32, #tpu.memory_space<smem>>) -> (i32, i32) {
    %c0_i32 = arith.constant 0 : i32
    %c0_i32_0 = arith.constant 0 : i32
    %c0_i32_1 = arith.constant 0 : i32
    return %c0_i32, %c0_i32_0 : i32, i32
  }
  func.func @transform_2(%arg0: i32, %arg1: memref<1xi32, #tpu.memory_space<smem>>) -> (i32, i32) {
    %c0_i32 = arith.constant 0 : i32
    %c0_i32_0 = arith.constant 0 : i32
    %c0_i32_1 = arith.constant 0 : i32
    return %c0_i32, %c0_i32_0 : i32, i32
  }
  func.func @transform_3(%arg0: i32, %arg1: memref<1xi32, #tpu.memory_space<smem>>) -> (i32, i32) {
    %c0_i32 = arith.constant 0 : i32
    %c0_i32_0 = arith.constant 0 : i32
    return %arg0, %c0_i32 : i32, i32
  }
  func.func @transform_4(%arg0: i32, %arg1: memref<1xi32, #tpu.memory_space<smem>>) -> (i32, i32) {
    %c0_i32 = arith.constant 0 : i32
    %c0_i32_0 = arith.constant 0 : i32
    return %arg0, %c0_i32 : i32, i32
  }
  func.func @transform_5(%arg0: i32, %arg1: memref<1xi32, #tpu.memory_space<smem>>) -> (i32, i32, i32) {
    %c0_i32 = arith.constant 0 : i32
    %c0_i32_0 = arith.constant 0 : i32
    %c0_i32_1 = arith.constant 0 : i32
    return %arg0, %c0_i32, %c0_i32_0 : i32, i32, i32
  }
}

</mosaic_0001>

<llo_original>
// kernel: tpu_custom_call.1
$region0: #{tpu_custom_call.1}
  #allocation0 [shape = 'u32[]', space=smem, size = 0x4, offset = 0x4, fixed_abs, tag = 'smem constant byte address 0x4 - core index']
  #allocation1 [shape = 'u32[144,128]{1,0:T(1,128)}', space=vmem, size = 0x12000, scoped, tag = 'internal scratch']
  #allocation2 [shape = 's32[1]{0}', space=sflag, size = 0x4, scoped, tag = 'scoped memory for tpu_custom_call.1']
  #allocation3 [shape = 's32[1]{0:T(128)S(6)}', space=smem, size = 0x200, scoped, tag = 'prefetched SMEM operand 0']
  %s0 = inlined_call_operand.<no memory space> [shape: s32[1], index: 0, kind: input, shape index: {}]
  %s1 = inlined_call_operand.hbm [shape: f32[256,128], index: 1, kind: input, shape index: {}]
  %s2 = inlined_call_operand.hbm [shape: f32[128,256], index: 2, kind: input, shape index: {}]
  %s3 = inlined_call_operand.vmem [shape: f32[1,256], index: 3, kind: input, shape index: {}]
  %s4 = inlined_call_operand.hbm [shape: f32[256,128], index: 4, kind: input, shape index: {}]
  %s5 = inlined_call_operand.hbm [shape: f32[256,128], index: 5, kind: output, shape index: {0}]
  %s6 = inlined_call_operand.hbm [shape: f32[2,1,128], index: 6, kind: output, shape index: {1}]
  %7 = xla_tuple %s5, %s6
  %s8 = sld [smem:[#allocation0]]
  $region69: #{tpu_custom_call.1} parent=0
    _
  %s10 = ssub.s32 1, %s8
  %s11 = scalar_select 0, %s10, %s8
  %12 = sst [smem:[#allocation3]] %s0
  $region1: #{tpu_custom_call.1} parent=0
    #allocation4 [shape = 'u8[131072]{0}', space=vmem, size = 0x20000, scoped, tag = 'input window, operand 1']
    #allocation5 [shape = 's32[2]{0}', space=sflag, size = 0x8, scoped, tag = 'scoped memory for tpu_custom_call.1']
    #allocation6 [shape = 's32[2]{0}', space=sflag, size = 0x8, scoped, tag = 'scoped memory for tpu_custom_call.1']
    #allocation7 [shape = 'u8[131072]{0}', space=vmem, size = 0x20000, scoped, tag = 'input window, operand 2, single buffered']
    #allocation8 [shape = 's32[1]{0}', space=sflag, size = 0x4, scoped, tag = 'scoped memory for tpu_custom_call.1']
    #allocation9 [shape = 'u8[131072]{0}', space=vmem, size = 0x20000, scoped, tag = 'input window, operand 4']
    #allocation10 [shape = 'u8[131072]{0}', space=vmem, size = 0x20000, scoped, tag = 'output window, operand 0']
    #allocation11 [shape = 'u8[1024]{0}', space=vmem, size = 0x400, scoped, tag = 'output window, operand 1']
    #allocation12 [shape = 's32[2]{0}', space=sflag, size = 0x8, scoped, tag = 'scoped memory for tpu_custom_call.1']
    %13 = vsyncpa [#allocation5], 0
    %s14 = scalar_lea.sflag [#allocation5], 1
    %15 = vsyncpa %s14, 0
    %16 = vsyncpa [#allocation8], 0
    %17 = vsyncpa [#allocation6], 0
    %s18 = scalar_lea.sflag [#allocation6], 1
    %19 = vsyncpa %s18, 0
    %20 = vsyncpa [#allocation12], 0
    %s21 = scalar_lea.sflag [#allocation12], 1
    %22 = vsyncpa %s21, 0
    loop: start=0, step=1, limit=4
    $region2: #{tpu_custom_call.1} parent=1 // loop_pre_header
      _
    $region3: #{tpu_custom_call.1} parent=1 // loop_header
      %s24 = sphi 0, %s28
      %p25 = scmp.ge.s32.totalorder %s24, 4
      %s34 = sphi 0, %s36
      %s37 = sphi 0, %s34
      %s38 = sphi 0, %s37
      %s54 = sphi 0, %s38
      %s58 = sphi 0, %s58
      %s60 = sphi 0, %s58
      %s61 = sphi 0, %s60
      %s75 = sphi 0, %s61
      %s79 = sphi 0, %s79
      %s81 = sphi 0, %s79
      %s82 = sphi 0, %s81
      %s96 = sphi 0, %s82
      %s102 = sphi 0, %s104
      %s105 = sphi 0, %s102
      %s106 = sphi 0, %s105
      %s122 = sphi 0, %s106
      %s128 = sphi 0, %s130
      %s131 = sphi 0, %s128
      %s132 = sphi 0, %s131
      %s148 = sphi 0, %s132
      %s154 = sphi 0, %s156
      %s157 = sphi 0, %s154
      %s158 = sphi 0, %s157
      %s174 = sphi 0, %s158
    $region4: #{tpu_custom_call.1} parent=1 // loop_header_branch
      %27 = sbr.rel (%p25) target = $region8
    $region5: #{tpu_custom_call.1} parent=1 // loop_body
      %s29 = ssub.s32 %s24, 1
      %s30 = ssub.s32 %s24, 2
      %s31 = sadd.s32 %s24, 1
      %s32 = ssub.s32 %s24, %s31
      %p33 = scmp.eq.s32.totalorder %s32, 0
      %s35 = sadd.s32 %s34, 1
      %s36 = scalar_select %p33, %s34, %s35
      %p39 = pneg %p33
      %p40 = scmp.eq.s32.totalorder %s24, 1
      %p41 = por %p39, %p40
      %p42 = scmp.ne.s32.totalorder %s34, %s37
      %p43 = scmp.eq.s32.totalorder %s24, 0
      %p44 = por %p42, %p43
      %p45 = scmp.ne.s32.totalorder %s34, %s37
      %p46 = scmp.eq.s32.totalorder %s29, 1
      %p47 = por %p45, %p46
      %p48 = scmp.ne.s32.totalorder %s37, %s38
      %p49 = scmp.eq.s32.totalorder %s29, 0
      %p50 = por %p48, %p49
      %p51 = scmp.ne.s32.totalorder %s37, %s38
      %p52 = scmp.eq.s32.totalorder %s30, 1
      %p53 = por %p51, %p52
      %p55 = scmp.ne.s32.totalorder %s38, %s54
      %p56 = scmp.eq.s32.totalorder %s30, 0
      %p57 = por %p55, %p56
      %s59 = sadd.s32 %s58, 1
      %p62 = scmp.eq.s32.totalorder %s24, 1
      %p63 = scmp.ne.s32.totalorder %s58, %s60
      %p64 = scmp.eq.s32.totalorder %s24, 0
      %p65 = por %p63, %p64
      %p66 = scmp.ne.s32.totalorder %s58, %s60
      %p67 = scmp.eq.s32.totalorder %s29, 1
      %p68 = por %p66, %p67
      %p69 = scmp.ne.s32.totalorder %s60, %s61
      %p70 = scmp.eq.s32.totalorder %s29, 0
      %p71 = por %p69, %p70
      %p72 = scmp.ne.s32.totalorder %s60, %s61
      %p73 = scmp.eq.s32.totalorder %s30, 1
      %p74 = por %p72, %p73
      %p76 = scmp.ne.s32.totalorder %s61, %s75
      %p77 = scmp.eq.s32.totalorder %s30, 0
      %p78 = por %p76, %p77
      %s80 = sadd.s32 %s79, 1
      %p83 = scmp.eq.s32.totalorder %s24, 1
      %p84 = scmp.ne.s32.totalorder %s79, %s81
      %p85 = scmp.eq.s32.totalorder %s24, 0
      %p86 = por %p84, %p85
      %p87 = scmp.ne.s32.totalorder %s79, %s81
      %p88 = scmp.eq.s32.totalorder %s29, 1
      %p89 = por %p87, %p88
      %p90 = scmp.ne.s32.totalorder %s81, %s82
      %p91 = scmp.eq.s32.totalorder %s29, 0
      %p92 = por %p90, %p91
      %p93 = scmp.ne.s32.totalorder %s81, %s82
      %p94 = scmp.eq.s32.totalorder %s30, 1
      %p95 = por %p93, %p94
      %p97 = scmp.ne.s32.totalorder %s82, %s96
      %p98 = scmp.eq.s32.totalorder %s30, 0
      %p99 = por %p97, %p98
      %s100 = ssub.s32 %s24, %s31
      %p101 = scmp.eq.s32.totalorder %s100, 0
      %s103 = sadd.s32 %s102, 1
      %s104 = scalar_select %p101, %s102, %s103
      %p107 = pneg %p101
      %p108 = scmp.eq.s32.totalorder %s24, 1
      %p109 = por %p107, %p108
      %p110 = scmp.ne.s32.totalorder %s102, %s105
      %p111 = scmp.eq.s32.totalorder %s24, 0
      %p112 = por %p110, %p111
      %p113 = scmp.ne.s32.totalorder %s102, %s105
      %p114 = scmp.eq.s32.totalorder %s29, 1
      %p115 = por %p113, %p114
      %p116 = scmp.ne.s32.totalorder %s105, %s106
      %p117 = scmp.eq.s32.totalorder %s29, 0
      %p118 = por %p116, %p117
      %p119 = scmp.ne.s32.totalorder %s105, %s106
      %p120 = scmp.eq.s32.totalorder %s30, 1
      %p121 = por %p119, %p120
      %p123 = scmp.ne.s32.totalorder %s106, %s122
      %p124 = scmp.eq.s32.totalorder %s30, 0
      %p125 = por %p123, %p124
      %s126 = ssub.s32 %s24, %s31
      %p127 = scmp.eq.s32.totalorder %s126, 0
      %s129 = sadd.s32 %s128, 1
      %s130 = scalar_select %p127, %s128, %s129
      %p133 = pneg %p127
      %p134 = scmp.eq.s32.totalorder %s24, 1
      %p135 = por %p133, %p134
      %p136 = scmp.ne.s32.totalorder %s128, %s131
      %p137 = scmp.eq.s32.totalorder %s24, 0
      %p138 = por %p136, %p137
      %p139 = scmp.ne.s32.totalorder %s128, %s131
      %p140 = scmp.eq.s32.totalorder %s29, 1
      %p141 = por %p139, %p140
      %p142 = scmp.ne.s32.totalorder %s131, %s132
      %p143 = scmp.eq.s32.totalorder %s29, 0
      %p144 = por %p142, %p143
      %p145 = scmp.ne.s32.totalorder %s131, %s132
      %p146 = scmp.eq.s32.totalorder %s30, 1
      %p147 = por %p145, %p146
      %p149 = scmp.ne.s32.totalorder %s132, %s148
      %p150 = scmp.eq.s32.totalorder %s30, 0
      %p151 = por %p149, %p150
      %s152 = ssub.s32 %s24, %s31
      %p153 = scmp.eq.s32.totalorder %s152, 0
      %s155 = sadd.s32 %s154, 1
      %s156 = scalar_select %p153, %s154, %s155
      %p159 = pneg %p153
      %p160 = scmp.eq.s32.totalorder %s24, 1
      %p161 = por %p159, %p160
      %p162 = scmp.ne.s32.totalorder %s154, %s157
      %p163 = scmp.eq.s32.totalorder %s24, 0
      %p164 = por %p162, %p163
      %p165 = scmp.ne.s32.totalorder %s154, %s157
      %p166 = scmp.eq.s32.totalorder %s29, 1
      %p167 = por %p165, %p166
      %p168 = scmp.ne.s32.totalorder %s157, %s158
      %p169 = scmp.eq.s32.totalorder %s29, 0
      %p170 = por %p168, %p169
      %p171 = scmp.ne.s32.totalorder %s157, %s158
      %p172 = scmp.eq.s32.totalorder %s30, 1
      %p173 = por %p171, %p172
      %p175 = scmp.ne.s32.totalorder %s158, %s174
      %p176 = scmp.eq.s32.totalorder %s30, 0
      %p177 = por %p175, %p176
      %p178 = scmp.le.s32.totalorder 1, %s24
      %p179 = scmp.lt.s32.totalorder %s24, 3
      %p180 = pnand %p178, %p179
      %p181 = pneg %p180
      // Predicated region
      $region9: #{tpu_custom_call.1} parent=5 // pred_check
        _
      $region10: #{tpu_custom_call.1} parent=5 // pred_check_branch
        %183 = sbr.rel (%p180) target = $region12
      $region11: #{tpu_custom_call.1} parent=5 // pred_region
        %s184 = ssub.s32 %s24, 1
        // Predicated region
        $region13: #{tpu_custom_call.1} parent=11 // pred_check
          %p185 = pneg %p71
        $region14: #{tpu_custom_call.1} parent=11 // pred_check_branch
          %187 = sbr.rel (%p185) target = $region16
        $region15: #{tpu_custom_call.1} parent=11 // pred_region
          %s189 = ssub.s32 4096, 4096
          %190 = vsyncadd [#allocation8], %s189
          %s191 = sshll.u32 [#allocation7], 4
          %s192 = int_to_ptr.vmem [resolvable:$true] %s191
          %197 = dma.hbm_to_vmem [thread:$0]  %s2, 4096, %s192, [#allocation8], 256, 256, 16
        $region16: #{tpu_custom_call.1} parent=11 // pred_fallthru
          _
        // Predicated region
        $region17: #{tpu_custom_call.1} parent=11 // pred_check
          %p198 = pneg %p92
        $region18: #{tpu_custom_call.1} parent=11 // pred_check_branch
          %200 = sbr.rel (%p198) target = $region20
        $region19: #{tpu_custom_call.1} parent=11 // pred_region
          _
        $region20: #{tpu_custom_call.1} parent=11 // pred_fallthru
          _
      $region12: #{tpu_custom_call.1} parent=5 // pred_fallthru
        _
      %p201 = scmp.lt.s32.totalorder %s24, 2
      // Predicated region
      $region21: #{tpu_custom_call.1} parent=5 // pred_check
        %p202 = pneg %p201
      $region22: #{tpu_custom_call.1} parent=5 // pred_check_branch
        %204 = sbr.rel (%p202) target = $region24
      $region23: #{tpu_custom_call.1} parent=5 // pred_region
        // Predicated region
        $region25: #{tpu_custom_call.1} parent=23 // pred_check
          %p205 = pneg %p44
        $region26: #{tpu_custom_call.1} parent=23 // pred_check_branch
          %207 = sbr.rel (%p205) target = $region28
        $region27: #{tpu_custom_call.1} parent=23 // pred_region
          %s208 = sand.u32 %s24, 1
          %s209 = scalar_lea.sflag [#allocation5], %s208
          %s210 = sand.u32 %s34, 1
          %s211 = smul.addr %s210, 128
          %s212 = scalar_lea.vmem [#allocation4], %s211
          %s213 = smul.u32 16, %s24
          %s215 = ssub.s32 2048, 2048
          %216 = vsyncadd %s209, %s215
          %s217 = smul.addr %s213, 128
          %s218 = scalar_lea.hbm %s1, %s217
          %s219 = sshll.u32 %s212, 4
          %s220 = int_to_ptr.vmem [resolvable:$true] %s219
          %225 = dma.hbm_to_vmem [thread:$0]  %s218, 2048, %s220, %s209, 128, 128, 8
        $region28: #{tpu_custom_call.1} parent=23 // pred_fallthru
          _
        // Predicated region
        $region29: #{tpu_custom_call.1} parent=23 // pred_check
          %p226 = pneg %p112
        $region30: #{tpu_custom_call.1} parent=23 // pred_check_branch
          %228 = sbr.rel (%p226) target = $region32
        $region31: #{tpu_custom_call.1} parent=23 // pred_region
          %s229 = sand.u32 %s24, 1
          %s230 = scalar_lea.sflag [#allocation5], %s229
          %s231 = sand.u32 %s102, 1
          %s232 = smul.addr %s231, 128
          %s233 = scalar_lea.vmem [#allocation9], %s232
          %s234 = smul.u32 16, %s24
          %s236 = ssub.s32 2048, 2048
          %237 = vsyncadd %s230, %s236
          %s238 = smul.addr %s234, 128
          %s239 = scalar_lea.hbm %s4, %s238
          %s240 = sshll.u32 %s233, 4
          %s241 = int_to_ptr.vmem [resolvable:$true] %s240
          %246 = dma.hbm_to_vmem [thread:$0]  %s239, 2048, %s241, %s230, 128, 128, 8
        $region32: #{tpu_custom_call.1} parent=23 // pred_fallthru
          _
      $region24: #{tpu_custom_call.1} parent=5 // pred_fallthru
        _
      %p247 = scmp.le.s32.totalorder 1, %s24
      %p248 = scmp.lt.s32.totalorder %s24, 3
      %p249 = pnand %p247, %p248
      %p250 = pneg %p249
      // Predicated region
      $region33: #{tpu_custom_call.1} parent=5 // pred_check
        _
      $region34: #{tpu_custom_call.1} parent=5 // pred_check_branch
        %252 = sbr.rel (%p249) target = $region36
      $region35: #{tpu_custom_call.1} parent=5 // pred_region
        %s253 = ssub.s32 %s24, 1
        %s254 = sand.u32 %s29, 1
        %s255 = scalar_lea.sflag [#allocation5], %s254
        %s256 = sand.u32 %s37, 1
        %s257 = smul.addr %s256, 128
        %s258 = scalar_lea.vmem [#allocation4], %s257
        // Predicated region
        $region37: #{tpu_custom_call.1} parent=35 // pred_check
          %p259 = pneg %p50
        $region38: #{tpu_custom_call.1} parent=35 // pred_check_branch
          %261 = sbr.rel (%p259) target = $region40
        $region39: #{tpu_custom_call.1} parent=35 // pred_region
          %262 = dma.done %s255, 2048
        $region40: #{tpu_custom_call.1} parent=35 // pred_fallthru
          _
        // Predicated region
        $region41: #{tpu_custom_call.1} parent=35 // pred_check
          %p263 = pneg %p71
        $region42: #{tpu_custom_call.1} parent=35 // pred_check_branch
          %265 = sbr.rel (%p263) target = $region44
        $region43: #{tpu_custom_call.1} parent=35 // pred_region
          %266 = dma.done [#allocation8], 4096
        $region44: #{tpu_custom_call.1} parent=35 // pred_fallthru
          _
        %s267 = sand.u32 %s29, 1
        %s268 = scalar_lea.sflag [#allocation5], %s267
        %s269 = sand.u32 %s105, 1
        %s270 = smul.addr %s269, 128
        %s271 = scalar_lea.vmem [#allocation9], %s270
        // Predicated region
        $region45: #{tpu_custom_call.1} parent=35 // pred_check
          %p272 = pneg %p118
        $region46: #{tpu_custom_call.1} parent=35 // pred_check_branch
          %274 = sbr.rel (%p272) target = $region48
        $region47: #{tpu_custom_call.1} parent=35 // pred_region
          %275 = dma.done %s268, 2048
        $region48: #{tpu_custom_call.1} parent=35 // pred_fallthru
          _
        %s276 = sand.u32 %s29, 1
        %s277 = scalar_lea.sflag [#allocation5], %s276
        %s278 = sand.u32 %s37, 1
        %s279 = smul.addr %s278, 128
        %s280 = scalar_lea.vmem [#allocation4], %s279
        %p281 = pneg %p50
        %p282 = pneg %p47
        %p283 = pneg %p71
        %p284 = pneg %p68
        %p285 = pneg %p92
        %p286 = pneg %p89
        %s287 = sand.u32 %s29, 1
        %s288 = scalar_lea.sflag [#allocation5], %s287
        %s289 = sand.u32 %s105, 1
        %s290 = smul.addr %s289, 128
        %s291 = scalar_lea.vmem [#allocation9], %s290
        %p292 = pneg %p118
        %p293 = pneg %p115
        %p294 = pneg %p144
        %p295 = pneg %p141
        %s296 = sand.u32 %s131, 1
        %s297 = scalar_lea.sflag [#allocation6], %s296
        %s298 = sand.u32 %s131, 1
        %s299 = smul.addr %s298, 128
        %s300 = scalar_lea.vmem [#allocation10], %s299
        %p301 = pneg %p170
        %p302 = pneg %p167
        %s303 = sand.u32 %s157, 1
        %s304 = scalar_lea.sflag [#allocation12], %s303
        %s305 = sand.u32 %s157, 1
        %s306 = scalar_lea.vmem [#allocation11], %s305
        %s307 = smul.u32 16, %s29
        %s308 = smul.u32 16, %s29
        %s309 = smul.u32 16, %s29
        %v310 = vld [vmem:[%s258] sm:$0xff]
        %v311 = vld [vmem:[%s258 + $0x8] sm:$0xff]
        %v312 = vld [vmem:[%s258 + $0x10] sm:$0xff]
        %v313 = vld [vmem:[%s258 + $0x18] sm:$0xff]
        %v314 = vld [vmem:[%s258 + $0x20] sm:$0xff]
        %v315 = vld [vmem:[%s258 + $0x28] sm:$0xff]
        %v316 = vld [vmem:[%s258 + $0x30] sm:$0xff]
        %v317 = vld [vmem:[%s258 + $0x38] sm:$0xff]
        %v318 = vld [vmem:[%s258 + $0x40] sm:$0xff]
        %v319 = vld [vmem:[%s258 + $0x48] sm:$0xff]
        %v320 = vld [vmem:[%s258 + $0x50] sm:$0xff]
        %v321 = vld [vmem:[%s258 + $0x58] sm:$0xff]
        %v322 = vld [vmem:[%s258 + $0x60] sm:$0xff]
        %v323 = vld [vmem:[%s258 + $0x68] sm:$0xff]
        %v324 = vld [vmem:[%s258 + $0x70] sm:$0xff]
        %v325 = vld [vmem:[%s258 + $0x78] sm:$0xff]
        %v326 = vld [vmem:[#allocation7] sm:$0xff]
        %v327 = vld [vmem:[#allocation7 + $0x8] sm:$0xff]
        %v328 = vld [vmem:[#allocation7 + $0x10] sm:$0xff]
        %v329 = vld [vmem:[#allocation7 + $0x18] sm:$0xff]
        %v330 = vld [vmem:[#allocation7 + $0x20] sm:$0xff]
        %v331 = vld [vmem:[#allocation7 + $0x28] sm:$0xff]
        %v332 = vld [vmem:[#allocation7 + $0x30] sm:$0xff]
        %v333 = vld [vmem:[#allocation7 + $0x38] sm:$0xff]
        %v334 = vld [vmem:[#allocation7 + $0x40] sm:$0xff]
        %v335 = vld [vmem:[#allocation7 + $0x48] sm:$0xff]
        %v336 = vld [vmem:[#allocation7 + $0x50] sm:$0xff]
        %v337 = vld [vmem:[#allocation7 + $0x58] sm:$0xff]
        %v338 = vld [vmem:[#allocation7 + $0x60] sm:$0xff]
        %v339 = vld [vmem:[#allocation7 + $0x68] sm:$0xff]
        %v340 = vld [vmem:[#allocation7 + $0x70] sm:$0xff]
        %v341 = vld [vmem:[#allocation7 + $0x78] sm:$0xff]
        %v342 = vld [vmem:[#allocation7 + $0x80] sm:$0xff]
        %v343 = vld [vmem:[#allocation7 + $0x88] sm:$0xff]
        %v344 = vld [vmem:[#allocation7 + $0x90] sm:$0xff]
        %v345 = vld [vmem:[#allocation7 + $0x98] sm:$0xff]
        %v346 = vld [vmem:[#allocation7 + $0xa0] sm:$0xff]
        %v347 = vld [vmem:[#allocation7 + $0xa8] sm:$0xff]
        %v348 = vld [vmem:[#allocation7 + $0xb0] sm:$0xff]
        %v349 = vld [vmem:[#allocation7 + $0xb8] sm:$0xff]
        %v350 = vld [vmem:[#allocation7 + $0xc0] sm:$0xff]
        %v351 = vld [vmem:[#allocation7 + $0xc8] sm:$0xff]
        %v352 = vld [vmem:[#allocation7 + $0xd0] sm:$0xff]
        %v353 = vld [vmem:[#allocation7 + $0xd8] sm:$0xff]
        %v354 = vld [vmem:[#allocation7 + $0xe0] sm:$0xff]
        %v355 = vld [vmem:[#allocation7 + $0xe8] sm:$0xff]
        %v356 = vld [vmem:[#allocation7 + $0xf0] sm:$0xff]
        %v357 = vld [vmem:[#allocation7 + $0xf8] sm:$0xff]
        %v358 = vld [vmem:[%s3] sm:$0x3]
        %v360 = vlaneseq
        %v361 = vshrl.u32 %v360, 7
        %v362 = vsub.s32 0, %v361
        %v363 = vrot.slane %v358, %v362
        %v364 = vlaneseq
        %v365 = vshrl.u32 %v364, 7
        %v366 = vsub.s32 1, %v365
        %v367 = vrot.slane %v358, %v366
        %370 = vmatprep.subr.mxu0 %v327
        %371 = vmatpush1.msra.mxu0 %v326
        %372 = vmatprep.subr.mxu0 %v329
        %373 = vmatpush1.msra.mxu0 %v328
        %374 = vmatprep.subr.mxu0 %v331
        %375 = vmatpush1.msra.mxu0 %v330
        %376 = vmatprep.subr.mxu0 %v333
        %377 = vmatpush1.msra.mxu0 %v332
        %378 = vmatprep.subr.mxu0 %v335
        %379 = vmatpush1.msra.mxu0 %v334
        %380 = vmatprep.subr.mxu0 %v337
        %381 = vmatpush1.msra.mxu0 %v336
        %382 = vmatprep.subr.mxu0 %v339
        %383 = vmatpush1.msra.mxu0 %v338
        %384 = vmatprep.subr.mxu0 %v341
        %385 = vmatpush1.msra.mxu0 %v340
        %386 = vmatprep.subr.mxu0 %v343
        %387 = vmatpush1.msra.mxu0 %v342
        %388 = vmatprep.subr.mxu0 %v345
        %389 = vmatpush1.msra.mxu0 %v344
        %390 = vmatprep.subr.mxu0 %v347
        %391 = vmatpush1.msra.mxu0 %v346
        %392 = vmatprep.subr.mxu0 %v349
        %393 = vmatpush1.msra.mxu0 %v348
        %394 = vmatprep.subr.mxu0 %v351
        %395 = vmatpush1.msra.mxu0 %v350
        %396 = vmatprep.subr.mxu0 %v353
        %397 = vmatpush1.msra.mxu0 %v352
        %398 = vmatprep.subr.mxu0 %v355
        %399 = vmatpush1.msra.mxu0 %v354
        %400 = vmatprep.subr.mxu0 %v357
        %401 = vmatpush1.msra.mxu0 %v356
        %402 = vmatprep.subr.mxu0 0.0
        %403 = vmatpush1.msra.mxu0 0.0
        %404 = vmatprep.subr.mxu0 0.0
        %405 = vmatpush1.msra.mxu0 0.0
        %406 = vmatprep.subr.mxu0 0.0
        %407 = vmatpush1.msra.mxu0 0.0
        %408 = vmatprep.subr.mxu0 0.0
        %409 = vmatpush1.msra.mxu0 0.0
        %410 = vmatprep.subr.mxu0 0.0
        %411 = vmatpush1.msra.mxu0 0.0
        %412 = vmatprep.subr.mxu0 0.0
        %413 = vmatpush1.msra.mxu0 0.0
        %414 = vmatprep.subr.mxu0 0.0
        %415 = vmatpush1.msra.mxu0 0.0
        %416 = vmatprep.subr.mxu0 0.0
        %417 = vmatpush1.msra.mxu0 0.0
        %418 = vmatprep.subr.mxu0 0.0
        %419 = vmatpush1.msra.mxu0 0.0
        %420 = vmatprep.subr.mxu0 0.0
        %421 = vmatpush1.msra.mxu0 0.0
        %422 = vmatprep.subr.mxu0 0.0
        %423 = vmatpush1.msra.mxu0 0.0
        %424 = vmatprep.subr.mxu0 0.0
        %425 = vmatpush1.msra.mxu0 0.0
        %426 = vmatprep.subr.mxu0 0.0
        %427 = vmatpush1.msra.mxu0 0.0
        %428 = vmatprep.subr.mxu0 0.0
        %429 = vmatpush1.msra.mxu0 0.0
        %430 = vmatprep.subr.mxu0 0.0
        %431 = vmatpush1.msra.mxu0 0.0
        %432 = vmatprep.subr.mxu0 0.0
        %433 = vmatpush1.msra.mxu0 0.0
        %434 = vmatprep.mubr.f32.mxu0 0.0
        %435 = vmatmul.mubr.f32.gmra.mrb[0].mxu0 %v310
        %v436 = vpop.f32.mrb[0].mxu0
        %v437 = vadd.f32 %v363, %v436
        %v438 = vpop.f32.mrb[0].mxu0
        %v439 = vadd.f32 %v367, %v438
        %440 = vmatprep.mubr.f32.mxu0 0.0
        %441 = vmatmul.mubr.f32.gmra.mrb[0].mxu0 %v311
        %v442 = vpop.f32.mrb[0].mxu0
        %v443 = vadd.f32 %v363, %v442
        %v444 = vpop.f32.mrb[0].mxu0
        %v445 = vadd.f32 %v367, %v444
        %446 = vmatprep.mubr.f32.mxu0 0.0
        %447 = vmatmul.mubr.f32.gmra.mrb[0].mxu0 %v312
        %v448 = vpop.f32.mrb[0].mxu0
        %v449 = vadd.f32 %v363, %v448
        %v450 = vpop.f32.mrb[0].mxu0
        %v451 = vadd.f32 %v367, %v450
        %452 = vmatprep.mubr.f32.mxu0 0.0
        %453 = vmatmul.mubr.f32.gmra.mrb[0].mxu0 %v313
        %v454 = vpop.f32.mrb[0].mxu0
        %v455 = vadd.f32 %v363, %v454
        %v456 = vpop.f32.mrb[0].mxu0
        %v457 = vadd.f32 %v367, %v456
        %458 = vmatprep.mubr.f32.mxu0 0.0
        %459 = vmatmul.mubr.f32.gmra.mrb[0].mxu0 %v314
        %v460 = vpop.f32.mrb[0].mxu0
        %v461 = vadd.f32 %v363, %v460
        %v462 = vpop.f32.mrb[0].mxu0
        %v463 = vadd.f32 %v367, %v462
        %464 = vmatprep.mubr.f32.mxu0 0.0
        %465 = vmatmul.mubr.f32.gmra.mrb[0].mxu0 %v315
        %v466 = vpop.f32.mrb[0].mxu0
        %v467 = vadd.f32 %v363, %v466
        %v468 = vpop.f32.mrb[0].mxu0
        %v469 = vadd.f32 %v367, %v468
        %470 = vmatprep.mubr.f32.mxu0 0.0
        %471 = vmatmul.mubr.f32.gmra.mrb[0].mxu0 %v316
        %v472 = vpop.f32.mrb[0].mxu0
        %v473 = vadd.f32 %v363, %v472
        %v474 = vpop.f32.mrb[0].mxu0
        %v475 = vadd.f32 %v367, %v474
        %476 = vmatprep.mubr.f32.mxu0 0.0
        %477 = vmatmul.mubr.f32.gmra.mrb[0].mxu0 %v317
        %v478 = vpop.f32.mrb[0].mxu0
        %v479 = vadd.f32 %v363, %v478
        %v480 = vpop.f32.mrb[0].mxu0
        %v481 = vadd.f32 %v367, %v480
        %482 = vmatprep.mubr.f32.mxu0 0.0
        %483 = vmatmul.mubr.f32.gmra.mrb[0].mxu0 %v318
        %v484 = vpop.f32.mrb[0].mxu0
        %v485 = vadd.f32 %v363, %v484
        %v486 = vpop.f32.mrb[0].mxu0
        %v487 = vadd.f32 %v367, %v486
        %488 = vmatprep.mubr.f32.mxu0 0.0
        %489 = vmatmul.mubr.f32.gmra.mrb[0].mxu0 %v319
        %v490 = vpop.f32.mrb[0].mxu0
        %v491 = vadd.f32 %v363, %v490
        %v492 = vpop.f32.mrb[0].mxu0
        %v493 = vadd.f32 %v367, %v492
        %494 = vmatprep.mubr.f32.mxu0 0.0
        %495 = vmatmul.mubr.f32.gmra.mrb[0].mxu0 %v320
        %v496 = vpop.f32.mrb[0].mxu0
        %v497 = vadd.f32 %v363, %v496
        %v498 = vpop.f32.mrb[0].mxu0
        %v499 = vadd.f32 %v367, %v498
        %500 = vmatprep.mubr.f32.mxu0 0.0
        %501 = vmatmul.mubr.f32.gmra.mrb[0].mxu0 %v321
        %v502 = vpop.f32.mrb[0].mxu0
        %v503 = vadd.f32 %v363, %v502
        %v504 = vpop.f32.mrb[0].mxu0
        %v505 = vadd.f32 %v367, %v504
        %506 = vmatprep.mubr.f32.mxu0 0.0
        %507 = vmatmul.mubr.f32.gmra.mrb[0].mxu0 %v322
        %v508 = vpop.f32.mrb[0].mxu0
        %v509 = vadd.f32 %v363, %v508
        %v510 = vpop.f32.mrb[0].mxu0
        %v511 = vadd.f32 %v367, %v510
        %512 = vmatprep.mubr.f32.mxu0 0.0
        %513 = vmatmul.mubr.f32.gmra.mrb[0].mxu0 %v323
        %v514 = vpop.f32.mrb[0].mxu0
        %v515 = vadd.f32 %v363, %v514
        %v516 = vpop.f32.mrb[0].mxu0
        %v517 = vadd.f32 %v367, %v516
        %518 = vmatprep.mubr.f32.mxu0 0.0
        %519 = vmatmul.mubr.f32.gmra.mrb[0].mxu0 %v324
        %v520 = vpop.f32.mrb[0].mxu0
        %v521 = vadd.f32 %v363, %v520
        %v522 = vpop.f32.mrb[0].mxu0
        %v523 = vadd.f32 %v367, %v522
        %524 = vmatprep.mubr.f32.mxu0 0.0
        %525 = vmatmul.mubr.f32.gmra.mrb[0].mxu0 %v325
        %v526 = vpop.f32.mrb[0].mxu0
        %v527 = vadd.f32 %v363, %v526
        %v528 = vpop.f32.mrb[0].mxu0
        %v529 = vadd.f32 %v367, %v528
        %530 = vdwg.mxu0
        %v531 = vld [vmem:[%s271] sm:$0xff]
        %v532 = vld [vmem:[%s271 + $0x8] sm:$0xff]
        %v533 = vld [vmem:[%s271 + $0x10] sm:$0xff]
        %v534 = vld [vmem:[%s271 + $0x18] sm:$0xff]
        %v535 = vld [vmem:[%s271 + $0x20] sm:$0xff]
        %v536 = vld [vmem:[%s271 + $0x28] sm:$0xff]
        %v537 = vld [vmem:[%s271 + $0x30] sm:$0xff]
        %v538 = vld [vmem:[%s271 + $0x38] sm:$0xff]
        %v539 = vld [vmem:[%s271 + $0x40] sm:$0xff]
        %v540 = vld [vmem:[%s271 + $0x48] sm:$0xff]
        %v541 = vld [vmem:[%s271 + $0x50] sm:$0xff]
        %v542 = vld [vmem:[%s271 + $0x58] sm:$0xff]
        %v543 = vld [vmem:[%s271 + $0x60] sm:$0xff]
        %v544 = vld [vmem:[%s271 + $0x68] sm:$0xff]
        %v545 = vld [vmem:[%s271 + $0x70] sm:$0xff]
        %v546 = vld [vmem:[%s271 + $0x78] sm:$0xff]
        %v547 = vmul.f32 %v437, %v531
        %v548 = vmul.f32 %v443, %v532
        %v549 = vmul.f32 %v449, %v533
        %v550 = vmul.f32 %v455, %v534
        %v551 = vmul.f32 %v461, %v535
        %v552 = vmul.f32 %v467, %v536
        %v553 = vmul.f32 %v473, %v537
        %v554 = vmul.f32 %v479, %v538
        %v555 = vmul.f32 %v485, %v539
        %v556 = vmul.f32 %v491, %v540
        %v557 = vmul.f32 %v497, %v541
        %v558 = vmul.f32 %v503, %v542
        %v559 = vmul.f32 %v509, %v543
        %v560 = vmul.f32 %v515, %v544
        %v561 = vmul.f32 %v521, %v545
        %v562 = vmul.f32 %v527, %v546
        %v563 = vadd.f32 %v439, %v547
        %v564 = vadd.f32 %v445, %v548
        %v565 = vadd.f32 %v451, %v549
        %v566 = vadd.f32 %v457, %v550
        %v567 = vadd.f32 %v463, %v551
        %v568 = vadd.f32 %v469, %v552
        %v569 = vadd.f32 %v475, %v553
        %v570 = vadd.f32 %v481, %v554
        %v571 = vadd.f32 %v487, %v555
        %v572 = vadd.f32 %v493, %v556
        %v573 = vadd.f32 %v499, %v557
        %v574 = vadd.f32 %v505, %v558
        %v575 = vadd.f32 %v511, %v559
        %v576 = vadd.f32 %v517, %v560
        %v577 = vadd.f32 %v523, %v561
        %v578 = vadd.f32 %v529, %v562
        %579 = vst [vmem:[%s300] sm:$0xff] %v563
        %580 = vst [vmem:[%s300 + $0x8] sm:$0xff] %v564
        %581 = vst [vmem:[%s300 + $0x10] sm:$0xff] %v565
        %582 = vst [vmem:[%s300 + $0x18] sm:$0xff] %v566
        %583 = vst [vmem:[%s300 + $0x20] sm:$0xff] %v567
        %584 = vst [vmem:[%s300 + $0x28] sm:$0xff] %v568
        %585 = vst [vmem:[%s300 + $0x30] sm:$0xff] %v569
        %586 = vst [vmem:[%s300 + $0x38] sm:$0xff] %v570
        %587 = vst [vmem:[%s300 + $0x40] sm:$0xff] %v571
        %588 = vst [vmem:[%s300 + $0x48] sm:$0xff] %v572
        %589 = vst [vmem:[%s300 + $0x50] sm:$0xff] %v573
        %590 = vst [vmem:[%s300 + $0x58] sm:$0xff] %v574
        %591 = vst [vmem:[%s300 + $0x60] sm:$0xff] %v575
        %592 = vst [vmem:[%s300 + $0x68] sm:$0xff] %v576
        %593 = vst [vmem:[%s300 + $0x70] sm:$0xff] %v577
        %594 = vst [vmem:[%s300 + $0x78] sm:$0xff] %v578
        %v595 = vmul.f32 %v437, %v437
        %v596 = vmul.f32 %v443, %v443
        %v597 = vmul.f32 %v449, %v449
        %v598 = vmul.f32 %v455, %v455
        %v599 = vmul.f32 %v461, %v461
        %v600 = vmul.f32 %v467, %v467
        %v601 = vmul.f32 %v473, %v473
        %v602 = vmul.f32 %v479, %v479
        %v603 = vmul.f32 %v485, %v485
        %v604 = vmul.f32 %v491, %v491
        %v605 = vmul.f32 %v497, %v497
        %v606 = vmul.f32 %v503, %v503
        %v607 = vmul.f32 %v509, %v509
        %v608 = vmul.f32 %v515, %v515
        %v609 = vmul.f32 %v521, %v521
        %v610 = vmul.f32 %v527, %v527
        %v611 = vmul.f32 %v439, %v439
        %v612 = vmul.f32 %v445, %v445
        %v613 = vmul.f32 %v451, %v451
        %v614 = vmul.f32 %v457, %v457
        %v615 = vmul.f32 %v463, %v463
        %v616 = vmul.f32 %v469, %v469
        %v617 = vmul.f32 %v475, %v475
        %v618 = vmul.f32 %v481, %v481
        %v619 = vmul.f32 %v487, %v487
        %v620 = vmul.f32 %v493, %v493
        %v621 = vmul.f32 %v499, %v499
        %v622 = vmul.f32 %v505, %v505
        %v623 = vmul.f32 %v511, %v511
        %v624 = vmul.f32 %v517, %v517
        %v625 = vmul.f32 %v523, %v523
        %v626 = vmul.f32 %v529, %v529
        %v627 = vadd.f32 %v611, %v595
        %v628 = vadd.f32 %v612, %v596
        %v629 = vadd.f32 %v613, %v597
        %v630 = vadd.f32 %v614, %v598
        %v631 = vadd.f32 %v615, %v599
        %v632 = vadd.f32 %v616, %v600
        %v633 = vadd.f32 %v617, %v601
        %v634 = vadd.f32 %v618, %v602
        %v635 = vadd.f32 %v619, %v603
        %v636 = vadd.f32 %v620, %v604
        %v637 = vadd.f32 %v621, %v605
        %v638 = vadd.f32 %v622, %v606
        %v639 = vadd.f32 %v623, %v607
        %v640 = vadd.f32 %v624, %v608
        %v641 = vadd.f32 %v625, %v609
        %v642 = vadd.f32 %v626, %v610
        %v643 = vlog2.pop %v595
        %v644 = vmul.f32 %v643, 0.6931472
        %v645 = vlog2.pop %v596
        %v646 = vmul.f32 %v645, 0.6931472
        %v647 = vlog2.pop %v597
        %v648 = vmul.f32 %v647, 0.6931472
        %v649 = vlog2.pop %v598
        %v650 = vmul.f32 %v649, 0.6931472
        %v651 = vlog2.pop %v599
        %v652 = vmul.f32 %v651, 0.6931472
        %v653 = vlog2.pop %v600
        %v654 = vmul.f32 %v653, 0.6931472
        %v655 = vlog2.pop %v601
        %v656 = vmul.f32 %v655, 0.6931472
        %v657 = vlog2.pop %v602
        %v658 = vmul.f32 %v657, 0.6931472
        %v659 = vlog2.pop %v603
        %v660 = vmul.f32 %v659, 0.6931472
        %v661 = vlog2.pop %v604
        %v662 = vmul.f32 %v661, 0.6931472
        %v663 = vlog2.pop %v605
        %v664 = vmul.f32 %v663, 0.6931472
        %v665 = vlog2.pop %v606
        %v666 = vmul.f32 %v665, 0.6931472
        %v667 = vlog2.pop %v607
        %v668 = vmul.f32 %v667, 0.6931472
        %v669 = vlog2.pop %v608
        %v670 = vmul.f32 %v669, 0.6931472
        %v671 = vlog2.pop %v609
        %v672 = vmul.f32 %v671, 0.6931472
        %v673 = vlog2.pop %v610
        %v674 = vmul.f32 %v673, 0.6931472
        %v675 = vsub.f32 %v627, %v644
        %v676 = vsub.f32 %v628, %v646
        %v677 = vsub.f32 %v629, %v648
        %v678 = vsub.f32 %v630, %v650
        %v679 = vsub.f32 %v631, %v652
        %v680 = vsub.f32 %v632, %v654
        %v681 = vsub.f32 %v633, %v656
        %v682 = vsub.f32 %v634, %v658
        %v683 = vsub.f32 %v635, %v660
        %v684 = vsub.f32 %v636, %v662
        %v685 = vsub.f32 %v637, %v664
        %v686 = vsub.f32 %v638, %v666
        %v687 = vsub.f32 %v639, %v668
        %v688 = vsub.f32 %v640, %v670
        %v689 = vsub.f32 %v641, %v672
        %v690 = vsub.f32 %v642, %v674
        %v691 = vsub.f32 %v675, 1.0
        %v692 = vsub.f32 %v676, 1.0
        %v693 = vsub.f32 %v677, 1.0
        %v694 = vsub.f32 %v678, 1.0
        %v695 = vsub.f32 %v679, 1.0
        %v696 = vsub.f32 %v680, 1.0
        %v697 = vsub.f32 %v681, 1.0
        %v698 = vsub.f32 %v682, 1.0
        %v699 = vsub.f32 %v683, 1.0
        %v700 = vsub.f32 %v684, 1.0
        %v701 = vsub.f32 %v685, 1.0
        %v702 = vsub.f32 %v686, 1.0
        %v703 = vsub.f32 %v687, 1.0
        %v704 = vsub.f32 %v688, 1.0
        %v705 = vsub.f32 %v689, 1.0
        %v706 = vsub.f32 %v690, 1.0
        %v707 = vlaneseq
        %v708 = vshrl.u32 %v707, 7
        %v709 = vadd.s32 %v708, 8
        %v710 = vadd.s32 %v708, 16
        %v711 = vadd.s32 %v708, 24
        %v712 = vadd.s32 %v708, 32
        %v713 = vadd.s32 %v708, 40
        %v714 = vadd.s32 %v708, 48
        %v715 = vadd.s32 %v708, 56
        %v716 = vadd.s32 %v708, 64
        %v717 = vadd.s32 %v708, 72
        %v718 = vadd.s32 %v708, 80
        %v719 = vadd.s32 %v708, 88
        %v720 = vadd.s32 %v708, 96
        %v721 = vadd.s32 %v708, 104
        %v722 = vadd.s32 %v708, 112
        %v723 = vadd.s32 %v708, 120
        %s724 = smul.u32 %s29, 128
        %v725 = vstv %s724
        %v726 = vadd.s32 %v708, %v725
        %v727 = vadd.s32 %v709, %v725
        %v728 = vadd.s32 %v710, %v725
        %v729 = vadd.s32 %v711, %v725
        %v730 = vadd.s32 %v712, %v725
        %v731 = vadd.s32 %v713, %v725
        %v732 = vadd.s32 %v714, %v725
        %v733 = vadd.s32 %v715, %v725
        %v734 = vadd.s32 %v716, %v725
        %v735 = vadd.s32 %v717, %v725
        %v736 = vadd.s32 %v718, %v725
        %v737 = vadd.s32 %v719, %v725
        %v738 = vadd.s32 %v720, %v725
        %v739 = vadd.s32 %v721, %v725
        %v740 = vadd.s32 %v722, %v725
        %v741 = vadd.s32 %v723, %v725
        %s742 = sld [smem:[#allocation3]]
        %v743 = vstv %s742
        %vm744 = vcmp.lt.s32.totalorder %v726, %v743
        %vm745 = vcmp.lt.s32.totalorder %v727, %v743
        %vm746 = vcmp.lt.s32.totalorder %v728, %v743
        %vm747 = vcmp.lt.s32.totalorder %v729, %v743
        %vm748 = vcmp.lt.s32.totalorder %v730, %v743
        %vm749 = vcmp.lt.s32.totalorder %v731, %v743
        %vm750 = vcmp.lt.s32.totalorder %v732, %v743
        %vm751 = vcmp.lt.s32.totalorder %v733, %v743
        %vm752 = vcmp.lt.s32.totalorder %v734, %v743
        %vm753 = vcmp.lt.s32.totalorder %v735, %v743
        %vm754 = vcmp.lt.s32.totalorder %v736, %v743
        %vm755 = vcmp.lt.s32.totalorder %v737, %v743
        %vm756 = vcmp.lt.s32.totalorder %v738, %v743
        %vm757 = vcmp.lt.s32.totalorder %v739, %v743
        %vm758 = vcmp.lt.s32.totalorder %v740, %v743
        %vm759 = vcmp.lt.s32.totalorder %v741, %v743
        %v760 = vsel %vm744, 1, 0
        %v761 = vsel %vm745, 1, 0
        %v762 = vsel %vm746, 1, 0
        %v763 = vsel %vm747, 1, 0
        %v764 = vsel %vm748, 1, 0
        %v765 = vsel %vm749, 1, 0
        %v766 = vsel %vm750, 1, 0
        %v767 = vsel %vm751, 1, 0
        %v768 = vsel %vm752, 1, 0
        %v769 = vsel %vm753, 1, 0
        %v770 = vsel %vm754, 1, 0
        %v771 = vsel %vm755, 1, 0
        %v772 = vsel %vm756, 1, 0
        %v773 = vsel %vm757, 1, 0
        %v774 = vsel %vm758, 1, 0
        %v775 = vsel %vm759, 1, 0
        %vm776 = vcmp.eq.s32.totalorder %v760, 1
        %vm777 = vcmp.eq.s32.totalorder %v761, 1
        %vm778 = vcmp.eq.s32.totalorder %v762, 1
        %vm779 = vcmp.eq.s32.totalorder %v763, 1
        %vm780 = vcmp.eq.s32.totalorder %v764, 1
        %vm781 = vcmp.eq.s32.totalorder %v765, 1
        %vm782 = vcmp.eq.s32.totalorder %v766, 1
        %vm783 = vcmp.eq.s32.totalorder %v767, 1
        %vm784 = vcmp.eq.s32.totalorder %v768, 1
        %vm785 = vcmp.eq.s32.totalorder %v769, 1
        %vm786 = vcmp.eq.s32.totalorder %v770, 1
        %vm787 = vcmp.eq.s32.totalorder %v771, 1
        %vm788 = vcmp.eq.s32.totalorder %v772, 1
        %vm789 = vcmp.eq.s32.totalorder %v773, 1
        %vm790 = vcmp.eq.s32.totalorder %v774, 1
        %vm791 = vcmp.eq.s32.totalorder %v775, 1
        %v792 = vsel %vm776, %v691, 0.0
        %v793 = vsel %vm777, %v692, 0.0
        %v794 = vsel %vm778, %v693, 0.0
        %v795 = vsel %vm779, %v694, 0.0
        %v796 = vsel %vm780, %v695, 0.0
        %v797 = vsel %vm781, %v696, 0.0
        %v798 = vsel %vm782, %v697, 0.0
        %v799 = vsel %vm783, %v698, 0.0
        %v800 = vsel %vm784, %v699, 0.0
        %v801 = vsel %vm785, %v700, 0.0
        %v802 = vsel %vm786, %v701, 0.0
        %v803 = vsel %vm787, %v702, 0.0
        %v804 = vsel %vm788, %v703, 0.0
        %v805 = vsel %vm789, %v704, 0.0
        %v806 = vsel %vm790, %v705, 0.0
        %v807 = vsel %vm791, %v706, 0.0
        %v808 = vadd.f32 %v792, %v793
        %v809 = vadd.f32 %v808, %v794
        %v810 = vadd.f32 %v809, %v795
        %v811 = vadd.f32 %v810, %v796
        %v812 = vadd.f32 %v811, %v797
        %v813 = vadd.f32 %v812, %v798
        %v814 = vadd.f32 %v813, %v799
        %v815 = vadd.f32 %v814, %v800
        %v816 = vadd.f32 %v815, %v801
        %v817 = vadd.f32 %v816, %v802
        %v818 = vadd.f32 %v817, %v803
        %v819 = vadd.f32 %v818, %v804
        %v820 = vadd.f32 %v819, %v805
        %v821 = vadd.f32 %v820, %v806
        %v822 = vadd.f32 %v821, %v807
        %v823 = vrot.slane %v822, 4
        %v824 = vadd.f32 %v822, %v823
        %v825 = vrot.slane %v824, 2
        %v826 = vadd.f32 %v824, %v825
        %v827 = vrot.slane %v826, 1
        %v828 = vadd.f32 %v826, %v827
        %829 = vst [vmem:[%s306] sm:$0x1] %v828
        %s830 = sand.u32 %s131, 1
        %s831 = scalar_lea.sflag [#allocation6], %s830
        %s832 = sand.u32 %s131, 1
        %s833 = smul.addr %s832, 128
        %s834 = scalar_lea.vmem [#allocation10], %s833
        %s835 = sand.u32 %s157, 1
        %s836 = scalar_lea.sflag [#allocation12], %s835
        %s837 = sand.u32 %s157, 1
        %s838 = scalar_lea.vmem [#allocation11], %s837
        // Predicated region
        $region49: #{tpu_custom_call.1} parent=35 // pred_check
          %p839 = pneg %p141
        $region50: #{tpu_custom_call.1} parent=35 // pred_check_branch
          %841 = sbr.rel (%p839) target = $region52
        $region51: #{tpu_custom_call.1} parent=35 // pred_region
          %s842 = smul.u32 16, %s29
          %s844 = ssub.s32 2048, 2048
          %845 = vsyncadd %s831, %s844
          %s846 = smul.addr %s842, 128
          %s847 = scalar_lea.hbm %s5, %s846
          %s848 = sshll.u32 %s834, 4
          %s849 = int_to_ptr.vmem [resolvable:$true] %s848
          %854 = dma.vmem_to_hbm [thread:$0]  %s849, 2048, %s847, %s831, 128, 128, 8
        $region52: #{tpu_custom_call.1} parent=35 // pred_fallthru
          _
        // Predicated region
        $region53: #{tpu_custom_call.1} parent=35 // pred_check
          %p855 = pneg %p167
        $region54: #{tpu_custom_call.1} parent=35 // pred_check_branch
          %857 = sbr.rel (%p855) target = $region56
        $region55: #{tpu_custom_call.1} parent=35 // pred_region
          %s859 = ssub.s32 16, 16
          %860 = vsyncadd %s836, %s859
          %s861 = smul.addr %s29, 16
          %s862 = scalar_lea.hbm %s6, %s861
          %s864 = sshll.u32 %s838, 4
          %s865 = int_to_ptr.vmem [resolvable:$true] %s864
          %867 = dma.vmem_to_hbm [thread:$0]  %s865, 16, %s862, %s836
        $region56: #{tpu_custom_call.1} parent=35 // pred_fallthru
          _
      $region36: #{tpu_custom_call.1} parent=5 // pred_fallthru
        _
      %p868 = scmp.le.s32.totalorder 2, %s24
      // Predicated region
      $region57: #{tpu_custom_call.1} parent=5 // pred_check
        %p869 = pneg %p868
      $region58: #{tpu_custom_call.1} parent=5 // pred_check_branch
        %871 = sbr.rel (%p869) target = $region60
      $region59: #{tpu_custom_call.1} parent=5 // pred_region
        %s872 = ssub.s32 %s24, 2
        // Predicated region
        $region61: #{tpu_custom_call.1} parent=59 // pred_check
          %p873 = pneg %p147
        $region62: #{tpu_custom_call.1} parent=59 // pred_check_branch
          %875 = sbr.rel (%p873) target = $region64
        $region63: #{tpu_custom_call.1} parent=59 // pred_region
          %s876 = sand.u32 %s132, 1
          %s877 = scalar_lea.sflag [#allocation6], %s876
          %s878 = sand.u32 %s132, 1
          %s879 = smul.addr %s878, 128
          %s880 = scalar_lea.vmem [#allocation10], %s879
          %881 = dma.done %s877, 2048
        $region64: #{tpu_custom_call.1} parent=59 // pred_fallthru
          _
        // Predicated region
        $region65: #{tpu_custom_call.1} parent=59 // pred_check
          %p882 = pneg %p173
        $region66: #{tpu_custom_call.1} parent=59 // pred_check_branch
          %884 = sbr.rel (%p882) target = $region68
        $region67: #{tpu_custom_call.1} parent=59 // pred_region
          %s885 = sand.u32 %s158, 1
          %s886 = scalar_lea.sflag [#allocation12], %s885
          %s887 = sand.u32 %s158, 1
          %s888 = scalar_lea.vmem [#allocation11], %s887
          %889 = dma.done %s886, 16
        $region68: #{tpu_custom_call.1} parent=59 // pred_fallthru
          _
      $region60: #{tpu_custom_call.1} parent=5 // pred_fallthru
        _
    $region6: #{tpu_custom_call.1} parent=1 // loop_footer
      %s28 = sadd.s32 1, %s24
    $region7: #{tpu_custom_call.1} parent=1 // loop_footer_branch
      %23 = sbr.rel target = $region3
    $region8: #{tpu_custom_call.1} parent=1 // loop_exit
      _
    %890 = vsyncpa [#allocation5], 1
    %s891 = scalar_lea.sflag [#allocation5], 1
    %892 = vsyncpa %s891, 1
    %893 = vsyncpa [#allocation8], 1
    %894 = vsyncpa [#allocation6], 1
    %s895 = scalar_lea.sflag [#allocation6], 1
    %896 = vsyncpa %s895, 1
    %897 = vsyncpa [#allocation12], 1
    %s898 = scalar_lea.sflag [#allocation12], 1
    %899 = vsyncpa %s898, 1

</llo_original>
